<compile_context>
chip_gen: v5e
topology: v5e:2x2
jax: 0.10.0
libtpu: 0.0.40
codegen_flags: <defaults>
</compile_context>

<pallas_src>
import functools
import math

import jax
import jax.numpy as jnp
from jax.experimental import pallas as pl
from jax.experimental.pallas import tpu as pltpu


def _dropout_consts(p):
    """24-bit drop threshold and inverted-dropout scale for probability p."""
    p = float(p)
    if p <= 0.0:
        return 0, 1.0
    if p >= 1.0:
        return 1 << 24, 0.0          # drop everything; scale unused
    return int(round(p * (1 << 24))), 1.0 / (1.0 - p)


def _plan_slab(total, itemsize):
    """Pick (rows, cols, row_tile, padded_total) for a lane-dense 2-D slab.

    cols is always a multiple of 128 (unmasked lane-dense stores); the flat
    tensor is padded in the wrapper only when total is not a multiple of 128.
    Row tiles are capped so one buffer is <= ~4 MiB (dtype-aware); with in+out
    double-buffered that is ~16 MiB, under the explicit 32 MiB VMEM limit on
    v5e/v6e/v7x.  When possible at least 2 grid steps are produced so v7x's
    second TensorCore gets work.
    """
    cols = None
    for want_rows in (16, 8, 1):
        for c in (1024, 512, 256, 128):
            if total % c == 0 and total // c >= want_rows:
                cols = c
                break
        if cols is not None:
            break
    if cols is None:
        # total not a multiple of 128 -> wrapper pads the flat vector.
        cols = 512 if total >= 512 * 8 else 128
    padded = -(-total // cols) * cols
    rows = padded // cols
    cap_rows = max(8, (4 << 20) // (cols * itemsize))
    cap_rows -= cap_rows % 8
    cap_rows = max(8, cap_rows)
    if rows <= 8:
        tr = rows                     # single full-extent block (tiny input)
    else:
        half = (rows // 2) - ((rows // 2) % 8)
        tr = min(cap_rows, max(8, half))
    return rows, cols, tr, padded


def _keep_bits_hw(seed_ref, shape):
    """24-bit uniform value per element from the hardware PRNG (per tile)."""
    pltpu.prng_seed(seed_ref[0], pl.program_id(0))
    bits = pltpu.prng_random_bits(shape)
    if bits.dtype != jnp.uint32:
        bits = pltpu.bitcast(bits, jnp.uint32)
    return bits >> jnp.uint32(8)


def _keep_bits_sw(seed_ref, shape, log2_cols, tr):
    """Fallback for non-TPU backends: single-multiply xorshift of flat index."""
    base = (pl.program_id(0) * tr) << log2_cols            # scalar-side base
    r_idx = jax.lax.broadcasted_iota(jnp.int32, shape, 0)
    c_idx = jax.lax.broadcasted_iota(jnp.int32, shape, 1)
    flat = (base + (r_idx << log2_cols) + c_idx).astype(jnp.uint32)
    h = flat ^ (seed_ref[0].astype(jnp.uint32) * jnp.uint32(0x9E3779B9))
    h = h ^ (h >> jnp.uint32(16))
    h = h * jnp.uint32(0x7FEB352D)
    h = h ^ (h >> jnp.uint32(15))
    return h >> jnp.uint32(8)


def _apply_kernel(seed_ref, x_ref, o_ref, *, thresh24, scale, use_hw,
                  log2_cols, tr):
    """out = (keep ? x * 1/(1-p) : 0) for this tile (fused select+mul)."""
    if use_hw:
        r24 = _keep_bits_hw(seed_ref, o_ref.shape)
    else:
        r24 = _keep_bits_sw(seed_ref, o_ref.shape, log2_cols, tr)
    keep = r24 >= jnp.uint32(thresh24)
    x = x_ref[...]
    o_ref[...] = jnp.where(keep, x * jnp.asarray(scale, x.dtype),
                           jnp.asarray(0, x.dtype))


def _mask_kernel(seed_ref, o_ref, *, thresh24, scale, use_hw, log2_cols, tr):
    """Output-only mask materialization (== F.dropout(ones, p))."""
    if use_hw:
        r24 = _keep_bits_hw(seed_ref, o_ref.shape)
    else:
        r24 = _keep_bits_sw(seed_ref, o_ref.shape, log2_cols, tr)
    keep = r24 >= jnp.uint32(thresh24)
    o_ref[...] = jnp.where(keep, jnp.asarray(scale, o_ref.dtype),
                           jnp.asarray(0, o_ref.dtype))


@functools.lru_cache(maxsize=None)
def _build_dropout_fn(shape, dtype_name, p, mask_only):
    """Build (once per shape/dtype/p) a jitted kernel; seed is runtime data."""
    dtype = jnp.dtype(dtype_name)
    shape = tuple(shape)
    total = int(math.prod(shape)) if shape else 1
    rows, cols, tr, padded = _plan_slab(total, dtype.itemsize)
    if padded >= (1 << 31):
        # TODO(synk): >2^31 elements would overflow int32 flat indexing in the
        # software fallback; unsupported here.
        raise ValueError("NDropout pallas kernel: tensor too large")
    thresh24, scale = _dropout_consts(p)
    use_hw = jax.default_backend() == "tpu"
    log2_cols = cols.bit_length() - 1
    grid = (pl.cdiv(rows, tr),)
    common = dict(thresh24=thresh24, scale=scale, use_hw=use_hw,
                  log2_cols=log2_cols, tr=tr)
    compiler_params = pltpu.CompilerParams(
        dimension_semantics=("parallel",),
        vmem_limit_bytes=32 << 20)

    def mk_block():
        return pl.BlockSpec((tr, cols), lambda i, seed: (i, 0))

    if mask_only:
        call = pl.pallas_call(
            functools.partial(_mask_kernel, **common),
            out_shape=jax.ShapeDtypeStruct((rows, cols), dtype),
            grid_spec=pltpu.PrefetchScalarGridSpec(
                num_scalar_prefetch=1, grid=grid,
                in_specs=[], out_specs=mk_block()),
            compiler_params=compiler_params)

        def run(seed_arr):
            out = call(seed_arr).reshape(-1)
            if padded != total:
                out = out[:total]
            return out.reshape(shape)
    else:
        call = pl.pallas_call(
            functools.partial(_apply_kernel, **common),
            out_shape=jax.ShapeDtypeStruct((rows, cols), dtype),
            grid_spec=pltpu.PrefetchScalarGridSpec(
                num_scalar_prefetch=1, grid=grid,
                in_specs=[mk_block()], out_specs=mk_block()),
            compiler_params=compiler_params)

        def run(x, seed_arr):
            xf = x.reshape(-1)
            if padded != total:
                xf = jnp.pad(xf, (0, padded - total))
            out = call(seed_arr, xf.reshape(rows, cols)).reshape(-1)
            if padded != total:
                out = out[:total]
            return out.reshape(shape)

    return jax.jit(run)


class NDropout:
    """Stateful inverted dropout with a persistent (seed-defined) mask."""

    def __init__(self, p, seed=0):
        self.p = float(p)
        self.training = True
        self._base_seed = int(seed)
        self._draws = 0          # fresh mask is drawn after each n_reset()
        self._seed_arr = None    # (1,) int32 seed of the active mask
        self._shape = None
        self._dtype = None
        self._mask_cache = None

    def n_reset(self):
        self._seed_arr = None
        self._shape = None
        self._dtype = None
        self._mask_cache = None

    def create_mask(self, x, seed=None):
        if seed is None:
            seed = self._base_seed + self._draws
            self._draws += 1
        self._seed_arr = jnp.asarray([int(seed)], dtype=jnp.int32)
        self._shape = tuple(x.shape)
        self._dtype = jnp.dtype(x.dtype).name
        self._mask_cache = None   # materialized lazily via `.mask`

    @property
    def mask(self):
        """Materialized mask == F.dropout(ones_like(x), p). Lazy, cold path."""
        if self._seed_arr is None:
            return None
        if self._mask_cache is None:
            fn = _build_dropout_fn(self._shape, self._dtype, self.p, True)
            self._mask_cache = fn(self._seed_arr)
        return self._mask_cache

    def __call__(self, x):
        if not self.training:
            return x
        if self._seed_arr is None:
            self.create_mask(x)
        if tuple(x.shape) != self._shape:
            raise ValueError(
                f"NDropout: input shape {tuple(x.shape)} does not match the "
                f"persistent mask shape {self._shape}; call n_reset() first.")
        if jnp.dtype(x.dtype).name != self._dtype:
            raise ValueError(
                "NDropout: input dtype does not match the persistent mask "
                "dtype; call n_reset() first.")
        # Hot path: one fused kernel (mask regenerated in-kernel from the
        # seed) -> only x is read and out is written; no mask HBM stream.
        fn = _build_dropout_fn(self._shape, self._dtype, self.p, False)
        return fn(x, self._seed_arr)


if __name__ == "__main__":
    key = jax.random.PRNGKey(0)
    x = jax.random.normal(key, (2, 4, 16, 16), dtype=jnp.float32)   # NCHW

    p = 0.3
    drop = NDropout(p=p, seed=0)
    drop.training = True

    y = jax.block_until_ready(drop(x))     # draws + applies the mask (fused)
    y2 = jax.block_until_ready(drop(x))    # reuses the SAME persistent mask
    assert jnp.allclose(y, y2)

    mask = jax.block_until_ready(drop.mask)  # output-only kernel, same plan
    scale = 1.0 / (1.0 - p)
    assert mask.shape == x.shape
    assert bool(jnp.all((mask == 0.0) | jnp.isclose(mask, scale)))
    assert jnp.allclose(y, mask * x)

    drop_frac = float(jnp.mean(mask == 0.0))
    assert abs(drop_frac - p) < 0.1, drop_frac

    # n_reset draws a fresh mask on the next forward (same compiled kernel)
    drop.n_reset()
    y3 = jax.block_until_ready(drop(x))
    assert jnp.allclose(y3, drop.mask * x)

    # eval mode: identity
    drop.training = False
    y_eval = jax.block_until_ready(drop(x))
    assert jnp.allclose(y_eval, x)

    print("KERNEL_OK")
</pallas_src>

<mosaic_0001>
module attributes {stable_mosaic.version = 11 : i64} {
  func.func @_apply_kernel(%arg0: i32, %arg1: memref<1xi32, #tpu.memory_space<smem>>, %arg2: memref<8x128xf32, #tpu.memory_space<vmem>>, %arg3: memref<8x128xf32, #tpu.memory_space<vmem>>) attributes {dimension_semantics = [#tpu.dimension_semantics<parallel>], iteration_bounds = array<i64: 2>, scalar_prefetch = 1 : i64, scratch_operands = 0 : i64, tpu.core_type = #tpu.core_type<tc>, window_params = [{transform_indices = @transform_0, window_bounds = array<i64: 8, 128>}, {transform_indices = @transform_1, window_bounds = array<i64: 8, 128>}]} {
    %c8_i32 = arith.constant 8 : i32
    %0 = arith.muli %arg0, %c8_i32 : i32
    %c7_i32 = arith.constant 7 : i32
    %1 = arith.shli %0, %c7_i32 : i32
    %2 = tpu.iota {dimensions = array<i32: 0>} : vector<8x128xi32>
    %3 = tpu.iota {dimensions = array<i32: 1>} : vector<8x128xi32>
    %c7_i32_0 = arith.constant 7 : i32
    %4 = vector.broadcast %c7_i32_0 : i32 to vector<8x128xi32>
    %5 = arith.shli %2, %4 : vector<8x128xi32>
    %6 = vector.broadcast %1 : i32 to vector<8x128xi32>
    %7 = arith.addi %6, %5 : vector<8x128xi32>
    %8 = arith.addi %7, %3 : vector<8x128xi32>
    %c0 = arith.constant 0 : index
    %9 = memref.load %arg1[%c0] : memref<1xi32, #tpu.memory_space<smem>>
    %c-1640531527_i32 = arith.constant -1640531527 : i32
    %10 = arith.muli %9, %c-1640531527_i32 : i32
    %11 = vector.broadcast %10 : i32 to vector<8x128xi32>
    %12 = arith.xori %8, %11 : vector<8x128xi32>
    %c16_i32 = arith.constant 16 : i32
    %13 = vector.broadcast %c16_i32 : i32 to vector<8x128xi32>
    %14 = arith.shrui %12, %13 : vector<8x128xi32>
    %15 = arith.xori %12, %14 : vector<8x128xi32>
    %c2146121005_i32 = arith.constant 2146121005 : i32
    %16 = vector.broadcast %c2146121005_i32 : i32 to vector<8x128xi32>
    %17 = arith.muli %15, %16 : vector<8x128xi32>
    %c15_i32 = arith.constant 15 : i32
    %18 = vector.broadcast %c15_i32 : i32 to vector<8x128xi32>
    %19 = arith.shrui %17, %18 : vector<8x128xi32>
    %20 = arith.xori %17, %19 : vector<8x128xi32>
    %c8_i32_1 = arith.constant 8 : i32
    %21 = vector.broadcast %c8_i32_1 : i32 to vector<8x128xi32>
    %22 = arith.shrui %20, %21 : vector<8x128xi32>
    %c5033165_i32 = arith.constant 5033165 : i32
    %23 = vector.broadcast %c5033165_i32 : i32 to vector<8x128xi32>
    %24 = arith.cmpi uge, %22, %23 : vector<8x128xi32>
    %c0_2 = arith.constant 0 : index
    %c0_3 = arith.constant 0 : index
    %25 = vector.load %arg2[%c0_2, %c0_3] : memref<8x128xf32, #tpu.memory_space<vmem>>, vector<8x128xf32>
    %cst = arith.constant 1.42857146 : f32
    %26 = vector.broadcast %cst : f32 to vector<8x128xf32>
    %27 = arith.mulf %25, %26 : vector<8x128xf32>
    %cst_4 = arith.constant 0.000000e+00 : f32
    %28 = vector.broadcast %cst_4 : f32 to vector<8x128xf32>
    %29 = arith.select %24, %27, %28 : vector<8x128xi1>, vector<8x128xf32>
    %c0_5 = arith.constant 0 : index
    %c0_6 = arith.constant 0 : index
    %30 = vector.load %arg3[%c0_5, %c0_6] : memref<8x128xf32, #tpu.memory_space<vmem>>, vector<8x128xf32>
    tpu.vector_store %arg3[%c0_5, %c0_6], %29 {strides = array<i32>} : memref<8x128xf32, #tpu.memory_space<vmem>>, vector<8x128xf32>,
    return
  }
  func.func @transform_0(%arg0: i32, %arg1: memref<1xi32, #tpu.memory_space<smem>>) -> (i32, i32) {
    %c0_i32 = arith.constant 0 : i32
    %c0_i32_0 = arith.constant 0 : i32
    return %arg0, %c0_i32 : i32, i32
  }
  func.func @transform_1(%arg0: i32, %arg1: memref<1xi32, #tpu.memory_space<smem>>) -> (i32, i32) {
    %c0_i32 = arith.constant 0 : i32
    %c0_i32_0 = arith.constant 0 : i32
    return %arg0, %c0_i32 : i32, i32
  }
}

</mosaic_0001>

<llo_original>
// kernel: run.1
$region0: #{run.1}
  #allocation0 [shape = 'u32[]', space=smem, size = 0x4, offset = 0x4, fixed_abs, tag = 'smem constant byte address 0x4 - core index']
  #allocation1 [shape = 'u32[72,128]{1,0:T(1,128)}', space=vmem, size = 0x9000, scoped, tag = 'internal scratch']
  #allocation2 [shape = 's32[1]{0}', space=sflag, size = 0x4, scoped, tag = 'scoped memory for run.1']
  #allocation3 [shape = 's32[1]{0:T(128)S(6)}', space=smem, size = 0x200, scoped, tag = 'prefetched SMEM operand 0']
  %s0 = inlined_call_operand.<no memory space> [shape: s32[1], index: 0, kind: input, shape index: {}]
  %s1 = inlined_call_operand.vmem [shape: f32[16,128], index: 1, kind: input, shape index: {}]
  %s2 = inlined_call_operand.vmem [shape: f32[16,128], index: 2, kind: output, shape index: {}]
  %s3 = sld [smem:[#allocation0]]
  $region37: #{run.1} parent=0
    _
  %s5 = ssub.s32 1, %s3
  %s6 = scalar_select 0, %s5, %s3
  %7 = sst [smem:[#allocation3]] %s0
  loop: start=0, step=1, limit=4
  $region2: #{run.1} parent=0 // loop_pre_header
    _
  $region3: #{run.1} parent=0 // loop_header
    %s9 = sphi 0, %s13
    %p10 = scmp.ge.s32.totalorder %s9, 4
    %s19 = sphi 0, %s21
    %s22 = sphi 0, %s19
    %s23 = sphi 0, %s22
    %s39 = sphi 0, %s23
    %s45 = sphi 0, %s47
    %s48 = sphi 0, %s45
    %s49 = sphi 0, %s48
    %s65 = sphi 0, %s49
  $region4: #{run.1} parent=0 // loop_header_branch
    %12 = sbr.rel (%p10) target = $region8
  $region5: #{run.1} parent=0 // loop_body
    %s14 = ssub.s32 %s9, 1
    %s15 = ssub.s32 %s9, 2
    %s16 = sadd.s32 %s9, 1
    %s17 = ssub.s32 %s9, %s16
    %p18 = scmp.eq.s32.totalorder %s17, 0
    %s20 = sadd.s32 %s19, 1
    %s21 = scalar_select %p18, %s19, %s20
    %p24 = pneg %p18
    %p25 = scmp.eq.s32.totalorder %s9, 1
    %p26 = por %p24, %p25
    %p27 = scmp.ne.s32.totalorder %s19, %s22
    %p28 = scmp.eq.s32.totalorder %s9, 0
    %p29 = por %p27, %p28
    %p30 = scmp.ne.s32.totalorder %s19, %s22
    %p31 = scmp.eq.s32.totalorder %s14, 1
    %p32 = por %p30, %p31
    %p33 = scmp.ne.s32.totalorder %s22, %s23
    %p34 = scmp.eq.s32.totalorder %s14, 0
    %p35 = por %p33, %p34
    %p36 = scmp.ne.s32.totalorder %s22, %s23
    %p37 = scmp.eq.s32.totalorder %s15, 1
    %p38 = por %p36, %p37
    %p40 = scmp.ne.s32.totalorder %s23, %s39
    %p41 = scmp.eq.s32.totalorder %s15, 0
    %p42 = por %p40, %p41
    %s43 = ssub.s32 %s9, %s16
    %p44 = scmp.eq.s32.totalorder %s43, 0
    %s46 = sadd.s32 %s45, 1
    %s47 = scalar_select %p44, %s45, %s46
    %p50 = pneg %p44
    %p51 = scmp.eq.s32.totalorder %s9, 1
    %p52 = por %p50, %p51
    %p53 = scmp.ne.s32.totalorder %s45, %s48
    %p54 = scmp.eq.s32.totalorder %s9, 0
    %p55 = por %p53, %p54
    %p56 = scmp.ne.s32.totalorder %s45, %s48
    %p57 = scmp.eq.s32.totalorder %s14, 1
    %p58 = por %p56, %p57
    %p59 = scmp.ne.s32.totalorder %s48, %s49
    %p60 = scmp.eq.s32.totalorder %s14, 0
    %p61 = por %p59, %p60
    %p62 = scmp.ne.s32.totalorder %s48, %s49
    %p63 = scmp.eq.s32.totalorder %s15, 1
    %p64 = por %p62, %p63
    %p66 = scmp.ne.s32.totalorder %s49, %s65
    %p67 = scmp.eq.s32.totalorder %s15, 0
    %p68 = por %p66, %p67
    %p69 = scmp.le.s32.totalorder 1, %s9
    %p70 = scmp.lt.s32.totalorder %s9, 3
    %p71 = pnand %p69, %p70
    %p72 = pneg %p71
    // Predicated region
    $region9: #{run.1} parent=5 // pred_check
      _
    $region10: #{run.1} parent=5 // pred_check_branch
      %74 = sbr.rel (%p71) target = $region12
    $region11: #{run.1} parent=5 // pred_region
      %s75 = ssub.s32 %s9, 1
    $region12: #{run.1} parent=5 // pred_fallthru
      _
    %p76 = scmp.lt.s32.totalorder %s9, 2
    // Predicated region
    $region13: #{run.1} parent=5 // pred_check
      %p77 = pneg %p76
    $region14: #{run.1} parent=5 // pred_check_branch
      %79 = sbr.rel (%p77) target = $region16
    $region15: #{run.1} parent=5 // pred_region
      // Predicated region
      $region17: #{run.1} parent=15 // pred_check
        %p80 = pneg %p29
      $region18: #{run.1} parent=15 // pred_check_branch
        %82 = sbr.rel (%p80) target = $region20
      $region19: #{run.1} parent=15 // pred_region
        %p83 = scmp.lt.s32.totalorder %s9, 1
        %s84 = scalar_select %p83, %s9, 1
        %s85 = smul.addr %s84, 8
        %s86 = scalar_lea.vmem %s1, %s85
      $region20: #{run.1} parent=15 // pred_fallthru
        _
    $region16: #{run.1} parent=5 // pred_fallthru
      _
    %p87 = scmp.le.s32.totalorder 1, %s9
    %p88 = scmp.lt.s32.totalorder %s9, 3
    %p89 = pnand %p87, %p88
    %p90 = pneg %p89
    // Predicated region
    $region21: #{run.1} parent=5 // pred_check
      _
    $region22: #{run.1} parent=5 // pred_check_branch
      %92 = sbr.rel (%p89) target = $region24
    $region23: #{run.1} parent=5 // pred_region
      %s93 = ssub.s32 %s9, 1
      %p94 = scmp.lt.s32.totalorder %s14, 1
      %s95 = scalar_select %p94, %s14, 1
      %s96 = smul.addr %s95, 8
      %s97 = scalar_lea.vmem %s1, %s96
      %p98 = pneg %p35
      %p99 = pneg %p32
      %p100 = pneg %p61
      %p101 = pneg %p58
      %p102 = scmp.lt.s32.totalorder %s14, 1
      %s103 = scalar_select %p102, %s14, 1
      %s104 = smul.addr %s103, 8
      %s105 = scalar_lea.vmem %s2, %s104
      %p106 = scmp.lt.s32.totalorder %s14, 1
      %s107 = scalar_select %p106, %s14, 1
      %s108 = smul.addr %s107, 8
      %s109 = scalar_lea.vmem %s1, %s108
      %p110 = scmp.lt.s32.totalorder %s14, 1
      %s111 = scalar_select %p110, %s14, 1
      %s112 = smul.addr %s111, 8
      %s113 = scalar_lea.vmem %s2, %s112
      %s114 = smul.u32 %s14, 8
      %s115 = sshll.u32 %s114, 7
      %v116 = vlaneseq
      %v117 = vshrl.u32 %v116, 7
      %v118 = vlaneseq
      %v119 = vand.u32 %v118, 127
      %v120 = vshll.u32 %v117, 7
      %v121 = vstv %s115
      %v122 = vadd.s32 %v121, %v120
      %v123 = vadd.s32 %v122, %v119
      %s124 = sld [smem:[#allocation3]]
      %s125 = smul.u32 %s124, 2654435769
      %v126 = vstv %s125
      %v127 = vxor.u32 %v123, %v126
      %v128 = vshrl.u32 %v127, 16
      %v129 = vxor.u32 %v127, %v128
      %v130 = vmul.u32 %v129, 2146121005
      %v131 = vshrl.u32 %v130, 15
      %v132 = vxor.u32 %v130, %v131
      %v133 = vshrl.u32 %v132, 8
      %v134 = vadd.s32 %v133, 2147483648
      %vm136 = vcmp.ge.s32.totalorder %v134, 2152516813
      %v137 = vld [vmem:[%s109] sm:$0xff]
      %v138 = vmul.f32 %v137, 1.4285715
      %v139 = vsel %vm136, %v138, 0.0
      %140 = vst [vmem:[%s113] sm:$0xff] %v139
      %p141 = scmp.lt.s32.totalorder %s14, 1
      %s142 = scalar_select %p141, %s14, 1
      %s143 = smul.addr %s142, 8
      %s144 = scalar_lea.vmem %s2, %s143
      // Predicated region
      $region25: #{run.1} parent=23 // pred_check
        %p145 = pneg %p58
      $region26: #{run.1} parent=23 // pred_check_branch
        %147 = sbr.rel (%p145) target = $region28
      $region27: #{run.1} parent=23 // pred_region
        _
      $region28: #{run.1} parent=23 // pred_fallthru
        _
    $region24: #{run.1} parent=5 // pred_fallthru
      _
    %p148 = scmp.le.s32.totalorder 2, %s9
    // Predicated region
    $region29: #{run.1} parent=5 // pred_check
      %p149 = pneg %p148
    $region30: #{run.1} parent=5 // pred_check_branch
      %151 = sbr.rel (%p149) target = $region32
    $region31: #{run.1} parent=5 // pred_region
      %s152 = ssub.s32 %s9, 2
      // Predicated region
      $region33: #{run.1} parent=31 // pred_check
        %p153 = pneg %p64
      $region34: #{run.1} parent=31 // pred_check_branch
        %155 = sbr.rel (%p153) target = $region36
      $region35: #{run.1} parent=31 // pred_region
        %p156 = scmp.lt.s32.totalorder %s15, 1
        %s157 = scalar_select %p156, %s15, 1
        %s158 = smul.addr %s157, 8
        %s159 = scalar_lea.vmem %s2, %s158
      $region36: #{run.1} parent=31 // pred_fallthru
        _
    $region32: #{run.1} parent=5 // pred_fallthru
      _
  $region6: #{run.1} parent=0 // loop_footer
    %s13 = sadd.s32 1, %s9
  $region7: #{run.1} parent=0 // loop_footer_branch
    %8 = sbr.rel target = $region3
  $region8: #{run.1} parent=0 // loop_exit
    _

</llo_original>
